<compile_context>
chip_gen: v5e
topology: v5e:2x2
jax: 0.10.0
libtpu: 0.0.40
codegen_flags: <defaults>
</compile_context>

<pallas_src>
import jax
import jax.numpy as jnp
from jax.experimental import pallas as pl
from jax.experimental.pallas import tpu as pltpu


def _round_up(x: int, m: int) -> int:
    return ((x + m - 1) // m) * m


def qnet_kernel(x_ref, w1_ref, b1_ref, w2_ref, b2_ref, w3_ref, b3_ref, o_ref):
    # All-f32: MXU is nowhere near saturated at K=16/32, so f32 matmuls cost
    # nothing measurable and match the original torch.nn.Linear numerics.
    h = jnp.dot(x_ref[...], w1_ref[...], preferred_element_type=jnp.float32)
    h = jnp.maximum(h + b1_ref[...], 0.0)
    h = jnp.dot(h, w2_ref[...], preferred_element_type=jnp.float32)
    h = jnp.maximum(h + b2_ref[...], 0.0)
    o_ref[...] = (jnp.dot(h, w3_ref[...], preferred_element_type=jnp.float32)
                  + b3_ref[...])


def prepare_params(params):
    """One-time (out of the hot loop) prep: f32 dtype, (1, out)-shaped biases."""
    prepped = []
    for w, b in params:
        prepped.append((jnp.asarray(w, jnp.float32),
                        jnp.asarray(b, jnp.float32).reshape(1, -1)))
    return tuple(prepped)


def qnet_forward(state, prepped_params, *, tb=1024):
    """state: (B, state_dim) float32. prepped_params: output of prepare_params()."""
    (w1, b1), (w2, b2), (w3, b3) = prepped_params
    B, state_dim = state.shape
    h1, h2, action_dim = w1.shape[1], w2.shape[1], w3.shape[1]

    # Batch tile: multiple of 8 sublanes, as large as practical (per-step fixed
    # overhead dominates).  At TB=1024 the double-buffered in/out tiles are <200 KB,
    # so no explicit vmem_limit_bytes is needed on any generation.
    TB = min(_round_up(max(tb, 8), 8), _round_up(B, 8))
    grid = (pl.cdiv(B, TB),)   # ragged last tile handled by Pallas masked writeback

    def const(shape):
        # Constant index_map -> weight/bias tiles stay VMEM-resident across steps.
        return pl.BlockSpec(shape, lambda i: (0, 0))

    flops = 2 * B * (state_dim * h1 + h1 * h2 + h2 * action_dim)
    bytes_accessed = 4 * (B * state_dim + B * action_dim
                          + w1.size + b1.size + w2.size + b2.size
                          + w3.size + b3.size)

    return pl.pallas_call(
        qnet_kernel,
        out_shape=jax.ShapeDtypeStruct((B, action_dim), jnp.float32),
        grid=grid,
        in_specs=[
            pl.BlockSpec((TB, state_dim), lambda i: (i, 0)),
            const(w1.shape), const(b1.shape),
            const(w2.shape), const(b2.shape),
            const(w3.shape), const(b3.shape),
        ],
        out_specs=pl.BlockSpec((TB, action_dim), lambda i: (i, 0)),
        compiler_params=pltpu.CompilerParams(
            dimension_semantics=("parallel",)),
        cost_estimate=pl.CostEstimate(flops=flops, transcendentals=0,
                                      bytes_accessed=bytes_accessed),
    )(state, w1, b1, w2, b2, w3, b3)


def qnet_reference(state, params):
    """Plain-JAX f32 reference mirroring the original PyTorch QNet forward."""
    h = state
    n = len(params)
    for i, (w, b) in enumerate(params):
        h = jnp.dot(h, w, precision=jax.lax.Precision.HIGHEST) + b.reshape(1, -1)
        if i < n - 1:
            h = jnp.maximum(h, 0.0)
    return h


def init_params(key, state_dim, dims, action_dim):
    """Deterministic init of the MLP [state_dim, *dims, action_dim] (torch-like)."""
    sizes = [state_dim, *dims, action_dim]
    params = []
    for i in range(len(sizes) - 1):
        key, kw, kb = jax.random.split(key, 3)
        bound = 1.0 / jnp.sqrt(sizes[i])
        w = jax.random.uniform(kw, (sizes[i], sizes[i + 1]), jnp.float32, -bound, bound)
        b = jax.random.uniform(kb, (1, sizes[i + 1]), jnp.float32, -bound, bound)
        params.append((w, b))
    return params


if __name__ == "__main__":
    key = jax.random.PRNGKey(0)
    state_dim = 16
    dims = (32, 32)
    action_dim = 4

    key, k_params = jax.random.split(key)
    params = init_params(k_params, state_dim, dims, action_dim)
    kernel_params = prepare_params(params)   # one-time prep, outside the hot path

    # Small batch (inference-like, single grid step).
    key, k1 = jax.random.split(key)
    state_small = jax.random.normal(k1, (8, state_dim), jnp.float32)
    q_small = qnet_forward(state_small, kernel_params)
    jax.block_until_ready(q_small)
    assert q_small.shape == (8, action_dim)
    assert jnp.allclose(q_small, qnet_reference(state_small, params),
                        atol=2e-3, rtol=2e-3)

    # Larger batch, not divisible by the tile -> multi-step grid (sharded across
    # v7x TensorCores), double-buffered pipelining, and a ragged masked last tile.
    key, k2 = jax.random.split(key)
    state_big = jax.random.normal(k2, (200, state_dim), jnp.float32)
    q_big = qnet_forward(state_big, kernel_params, tb=64)
    jax.block_until_ready(q_big)
    assert q_big.shape == (200, action_dim)
    assert jnp.allclose(q_big, qnet_reference(state_big, params),
                        atol=2e-3, rtol=2e-3)

    # TODO(synk): get_action()'s epsilon-greedy branch (torch.rand / torch.randint) is
    # host-side control flow and is intentionally left outside the kernel; only
    # forward() is fused.
    print("KERNEL_OK")
</pallas_src>

<mosaic_0001>
module attributes {stable_mosaic.version = 11 : i64} {
  func.func @qnet_kernel(%arg0: i32, %arg1: memref<8x16xf32, #tpu.memory_space<vmem>>, %arg2: memref<16x32xf32, #tpu.memory_space<vmem>>, %arg3: memref<1x32xf32, #tpu.memory_space<vmem>>, %arg4: memref<32x32xf32, #tpu.memory_space<vmem>>, %arg5: memref<1x32xf32, #tpu.memory_space<vmem>>, %arg6: memref<32x4xf32, #tpu.memory_space<vmem>>, %arg7: memref<1x4xf32, #tpu.memory_space<vmem>>, %arg8: memref<8x4xf32, #tpu.memory_space<vmem>>) attributes {dimension_semantics = [#tpu.dimension_semantics<parallel>], iteration_bounds = array<i64: 1>, scalar_prefetch = 0 : i64, scratch_operands = 0 : i64, tpu.core_type = #tpu.core_type<tc>, window_params = [{transform_indices = @transform_0, window_bounds = array<i64: 8, 16>}, {pipeline_mode = #tpu.pipeline_mode<synchronous>, transform_indices = @transform_1, window_bounds = array<i64: 16, 32>}, {pipeline_mode = #tpu.pipeline_mode<synchronous>, transform_indices = @transform_2, window_bounds = array<i64: 1, 32>}, {pipeline_mode = #tpu.pipeline_mode<synchronous>, transform_indices = @transform_3, window_bounds = array<i64: 32, 32>}, {pipeline_mode = #tpu.pipeline_mode<synchronous>, transform_indices = @transform_4, window_bounds = array<i64: 1, 32>}, {pipeline_mode = #tpu.pipeline_mode<synchronous>, transform_indices = @transform_5, window_bounds = array<i64: 32, 4>}, {pipeline_mode = #tpu.pipeline_mode<synchronous>, transform_indices = @transform_6, window_bounds = array<i64: 1, 4>}, {transform_indices = @transform_7, window_bounds = array<i64: 8, 4>}]} {
    %c0 = arith.constant 0 : index
    %c0_0 = arith.constant 0 : index
    %0 = vector.load %arg1[%c0, %c0_0] : memref<8x16xf32, #tpu.memory_space<vmem>>, vector<8x16xf32>
    %c0_1 = arith.constant 0 : index
    %c0_2 = arith.constant 0 : index
    %1 = vector.load %arg2[%c0_1, %c0_2] : memref<16x32xf32, #tpu.memory_space<vmem>>, vector<16x32xf32>
    %cst = arith.constant dense<0.000000e+00> : vector<8x32xf32>
    %2 = tpu.matmul %0, %1, %cst {dimension_numbers = #tpu.dot_dimension_numbers<[1], [0], [0], [1], [0, 0, 1, 1], [], []>} : vector<8x16xf32>, vector<16x32xf32>, vector<8x32xf32> -> vector<8x32xf32>
    %c0_3 = arith.constant 0 : index
    %c0_4 = arith.constant 0 : index
    %3 = vector.load %arg3[%c0_3, %c0_4] : memref<1x32xf32, #tpu.memory_space<vmem>>, vector<1x32xf32>
    %4 = vector.broadcast %3 : vector<1x32xf32> to vector<8x32xf32>
    %5 = arith.addf %2, %4 : vector<8x32xf32>
    %cst_5 = arith.constant 0.000000e+00 : f32
    %6 = vector.broadcast %cst_5 : f32 to vector<8x32xf32>
    %7 = arith.maximumf %5, %6 : vector<8x32xf32>
    %c0_6 = arith.constant 0 : index
    %c0_7 = arith.constant 0 : index
    %8 = vector.load %arg4[%c0_6, %c0_7] : memref<32x32xf32, #tpu.memory_space<vmem>>, vector<32x32xf32>
    %cst_8 = arith.constant dense<0.000000e+00> : vector<8x32xf32>
    %9 = tpu.matmul %7, %8, %cst_8 {dimension_numbers = #tpu.dot_dimension_numbers<[1], [0], [0], [1], [0, 0, 1, 1], [], []>} : vector<8x32xf32>, vector<32x32xf32>, vector<8x32xf32> -> vector<8x32xf32>
    %c0_9 = arith.constant 0 : index
    %c0_10 = arith.constant 0 : index
    %10 = vector.load %arg5[%c0_9, %c0_10] : memref<1x32xf32, #tpu.memory_space<vmem>>, vector<1x32xf32>
    %11 = vector.broadcast %10 : vector<1x32xf32> to vector<8x32xf32>
    %12 = arith.addf %9, %11 : vector<8x32xf32>
    %cst_11 = arith.constant 0.000000e+00 : f32
    %13 = vector.broadcast %cst_11 : f32 to vector<8x32xf32>
    %14 = arith.maximumf %12, %13 : vector<8x32xf32>
    %c0_12 = arith.constant 0 : index
    %c0_13 = arith.constant 0 : index
    %15 = vector.load %arg6[%c0_12, %c0_13] : memref<32x4xf32, #tpu.memory_space<vmem>>, vector<32x4xf32>
    %cst_14 = arith.constant dense<0.000000e+00> : vector<8x4xf32>
    %16 = tpu.matmul %14, %15, %cst_14 {dimension_numbers = #tpu.dot_dimension_numbers<[1], [0], [0], [1], [0, 0, 1, 1], [], []>} : vector<8x32xf32>, vector<32x4xf32>, vector<8x4xf32> -> vector<8x4xf32>
    %c0_15 = arith.constant 0 : index
    %c0_16 = arith.constant 0 : index
    %17 = vector.load %arg7[%c0_15, %c0_16] : memref<1x4xf32, #tpu.memory_space<vmem>>, vector<1x4xf32>
    %18 = vector.broadcast %17 : vector<1x4xf32> to vector<8x4xf32>
    %19 = arith.addf %16, %18 : vector<8x4xf32>
    %c0_17 = arith.constant 0 : index
    %c0_18 = arith.constant 0 : index
    %20 = vector.load %arg8[%c0_17, %c0_18] : memref<8x4xf32, #tpu.memory_space<vmem>>, vector<8x4xf32>
    tpu.vector_store %arg8[%c0_17, %c0_18], %19 {strides = array<i32>} : memref<8x4xf32, #tpu.memory_space<vmem>>, vector<8x4xf32>,
    return
  }
  func.func @transform_0(%arg0: i32) -> (i32, i32) {
    %c0_i32 = arith.constant 0 : i32
    %c0_i32_0 = arith.constant 0 : i32
    return %arg0, %c0_i32 : i32, i32
  }
  func.func @transform_1(%arg0: i32) -> (i32, i32) {
    %c0_i32 = arith.constant 0 : i32
    %c0_i32_0 = arith.constant 0 : i32
    %c0_i32_1 = arith.constant 0 : i32
    return %c0_i32, %c0_i32_0 : i32, i32
  }
  func.func @transform_2(%arg0: i32) -> (i32, i32) {
    %c0_i32 = arith.constant 0 : i32
    %c0_i32_0 = arith.constant 0 : i32
    %c0_i32_1 = arith.constant 0 : i32
    return %c0_i32, %c0_i32_0 : i32, i32
  }
  func.func @transform_3(%arg0: i32) -> (i32, i32) {
    %c0_i32 = arith.constant 0 : i32
    %c0_i32_0 = arith.constant 0 : i32
    %c0_i32_1 = arith.constant 0 : i32
    return %c0_i32, %c0_i32_0 : i32, i32
  }
  func.func @transform_4(%arg0: i32) -> (i32, i32) {
    %c0_i32 = arith.constant 0 : i32
    %c0_i32_0 = arith.constant 0 : i32
    %c0_i32_1 = arith.constant 0 : i32
    return %c0_i32, %c0_i32_0 : i32, i32
  }
  func.func @transform_5(%arg0: i32) -> (i32, i32) {
    %c0_i32 = arith.constant 0 : i32
    %c0_i32_0 = arith.constant 0 : i32
    %c0_i32_1 = arith.constant 0 : i32
    return %c0_i32, %c0_i32_0 : i32, i32
  }
  func.func @transform_6(%arg0: i32) -> (i32, i32) {
    %c0_i32 = arith.constant 0 : i32
    %c0_i32_0 = arith.constant 0 : i32
    %c0_i32_1 = arith.constant 0 : i32
    return %c0_i32, %c0_i32_0 : i32, i32
  }
  func.func @transform_7(%arg0: i32) -> (i32, i32) {
    %c0_i32 = arith.constant 0 : i32
    %c0_i32_0 = arith.constant 0 : i32
    return %arg0, %c0_i32 : i32, i32
  }
}

</mosaic_0001>

<llo_original>
// kernel: tpu_custom_call.1
$region0: #{tpu_custom_call.1}
  #allocation0 [shape = 'u32[]', space=smem, size = 0x4, offset = 0x4, fixed_abs, tag = 'smem constant byte address 0x4 - core index']
  #allocation1 [shape = 'u32[72,128]{1,0:T(1,128)}', space=vmem, size = 0x9000, scoped, tag = 'internal scratch']
  %s0 = inlined_call_operand.hbm [shape: f32[8,16], index: 0, kind: input, shape index: {}]
  %s1 = inlined_call_operand.hbm [shape: f32[16,32], index: 1, kind: input, shape index: {}]
  %s2 = inlined_call_operand.vmem [shape: f32[1,32], index: 2, kind: input, shape index: {}]
  %s3 = inlined_call_operand.vmem [shape: f32[32,32], index: 3, kind: input, shape index: {}]
  %s4 = inlined_call_operand.vmem [shape: f32[1,32], index: 4, kind: input, shape index: {}]
  %s5 = inlined_call_operand.vmem [shape: f32[32,4], index: 5, kind: input, shape index: {}]
  %s6 = inlined_call_operand.vmem [shape: f32[1,4], index: 6, kind: input, shape index: {}]
  %s7 = inlined_call_operand.vmem [shape: f32[8,4], index: 7, kind: output, shape index: {}]
  %s8 = sld [smem:[#allocation0]]
  $region46: #{tpu_custom_call.1} parent=0
    _
  %s10 = ssub.s32 1, %s8
  %s11 = scalar_select 0, %s10, %s8
  $region1: #{tpu_custom_call.1} parent=0
    #allocation2 [shape = 'u8[4096]{0}', space=vmem, size = 0x1000, scoped, tag = 'input window, operand 0, single buffered']
    #allocation3 [shape = 's32[1]{0}', space=sflag, size = 0x4, scoped, tag = 'scoped memory for tpu_custom_call.1']
    #allocation4 [shape = 'u8[8192]{0}', space=vmem, size = 0x2000, scoped, tag = 'input window, operand 1, single buffered']
    #allocation5 [shape = 's32[1]{0}', space=sflag, size = 0x4, scoped, tag = 'scoped memory for tpu_custom_call.1']
    %12 = vsyncpa [#allocation3], 0
    %13 = vsyncpa [#allocation5], 0
    // Predicated region
    $region2: #{tpu_custom_call.1} parent=1 // pred_check
      _
    $region3: #{tpu_custom_call.1} parent=1 // pred_check_branch
      %15 = sbr.rel (0) target = $region5
    $region4: #{tpu_custom_call.1} parent=1 // pred_region
      %17 = vsyncadd [#allocation3], 0
      %s19 = sshll.u32 %s0, 4
      %s20 = int_to_ptr.hbm [resolvable:$true] %s19
      %s21 = sshll.u32 [#allocation2], 4
      %s22 = int_to_ptr.vmem [resolvable:$true] %s21
      %24 = dma.hbm_to_vmem [thread:$0]  %s20, 128, %s22, [#allocation3]
    $region5: #{tpu_custom_call.1} parent=1 // pred_fallthru
      _
    // Predicated region
    $region6: #{tpu_custom_call.1} parent=1 // pred_check
      _
    $region7: #{tpu_custom_call.1} parent=1 // pred_check_branch
      %26 = sbr.rel (0) target = $region9
    $region8: #{tpu_custom_call.1} parent=1 // pred_region
      %28 = vsyncadd [#allocation5], 0
      %s29 = sshll.u32 %s1, 4
      %s30 = int_to_ptr.hbm [resolvable:$true] %s29
      %s31 = sshll.u32 [#allocation4], 4
      %s32 = int_to_ptr.vmem [resolvable:$true] %s31
      %37 = dma.hbm_to_vmem [thread:$0]  %s30, 256, %s32, [#allocation5], 128, 128, 8
    $region9: #{tpu_custom_call.1} parent=1 // pred_fallthru
      _
    // Predicated region
    $region10: #{tpu_custom_call.1} parent=1 // pred_check
      _
    $region11: #{tpu_custom_call.1} parent=1 // pred_check_branch
      %39 = sbr.rel (0) target = $region13
    $region12: #{tpu_custom_call.1} parent=1 // pred_region
      _
    $region13: #{tpu_custom_call.1} parent=1 // pred_fallthru
      _
    // Predicated region
    $region14: #{tpu_custom_call.1} parent=1 // pred_check
      _
    $region15: #{tpu_custom_call.1} parent=1 // pred_check_branch
      %41 = sbr.rel (0) target = $region17
    $region16: #{tpu_custom_call.1} parent=1 // pred_region
      _
    $region17: #{tpu_custom_call.1} parent=1 // pred_fallthru
      _
    // Predicated region
    $region18: #{tpu_custom_call.1} parent=1 // pred_check
      _
    $region19: #{tpu_custom_call.1} parent=1 // pred_check_branch
      %43 = sbr.rel (0) target = $region21
    $region20: #{tpu_custom_call.1} parent=1 // pred_region
      _
    $region21: #{tpu_custom_call.1} parent=1 // pred_fallthru
      _
    // Predicated region
    $region22: #{tpu_custom_call.1} parent=1 // pred_check
      _
    $region23: #{tpu_custom_call.1} parent=1 // pred_check_branch
      %45 = sbr.rel (0) target = $region25
    $region24: #{tpu_custom_call.1} parent=1 // pred_region
      _
    $region25: #{tpu_custom_call.1} parent=1 // pred_fallthru
      _
    // Predicated region
    $region26: #{tpu_custom_call.1} parent=1 // pred_check
      _
    $region27: #{tpu_custom_call.1} parent=1 // pred_check_branch
      %47 = sbr.rel (0) target = $region29
    $region28: #{tpu_custom_call.1} parent=1 // pred_region
      _
    $region29: #{tpu_custom_call.1} parent=1 // pred_fallthru
      _
    // Predicated region
    $region30: #{tpu_custom_call.1} parent=1 // pred_check
      _
    $region31: #{tpu_custom_call.1} parent=1 // pred_check_branch
      %49 = sbr.rel (0) target = $region33
    $region32: #{tpu_custom_call.1} parent=1 // pred_region
      %51 = dma.done [#allocation3], 128
    $region33: #{tpu_custom_call.1} parent=1 // pred_fallthru
      _
    // Predicated region
    $region34: #{tpu_custom_call.1} parent=1 // pred_check
      _
    $region35: #{tpu_custom_call.1} parent=1 // pred_check_branch
      %53 = sbr.rel (0) target = $region37
    $region36: #{tpu_custom_call.1} parent=1 // pred_region
      %55 = dma.done [#allocation5], 256
    $region37: #{tpu_custom_call.1} parent=1 // pred_fallthru
      _
    %v56 = vld [vmem:[#allocation2] sm:$0xff]
    %v57 = vld [vmem:[#allocation4] sm:$0xff]
    %v58 = vld [vmem:[#allocation4 + $0x8] sm:$0xff]
    %v59 = vld [vmem:[%s2] sm:$0x1]
    %v61 = vperm.slane %v59, 0
    %vm63 = vcmask 130048
    %v65 = vsel %vm63, %v56, 0
    %67 = vmatpush.msra.mxu0 0.0
    %68 = vmatpush.msra.mxu0 0.0
    %69 = vmatpush.msra.mxu0 0.0
    %70 = vmatpush.msra.mxu0 0.0
    %71 = vmatpush.msra.mxu0 0.0
    %72 = vmatpush.msra.mxu0 0.0
    %73 = vmatpush.msra.mxu0 0.0
    %74 = vmatpush.msra.mxu0 0.0
    %75 = vmatpush.msra.mxu0 0.0
    %76 = vmatpush.msra.mxu0 0.0
    %77 = vmatpush.msra.mxu0 0.0
    %78 = vmatpush.msra.mxu0 0.0
    %79 = vmatpush.msra.mxu0 0.0
    %80 = vmatpush.msra.mxu0 0.0
    %81 = vmatpush.msra.mxu0 %v58
    %82 = vmatpush.msra.mxu0 %v57
    %83 = vmatmul.f32.gmra.mxu0 %v65
    %v84 = vpop.f32.mrf.mxu0
    %v85 = vadd.f32 %v61, %v84
    %86 = vdwg.mxu0
    %v87 = vmax.f32 %v85, 0.0
    %v88 = vld [vmem:[%s3] sm:$0xff]
    %v89 = vld [vmem:[%s3 + $0x8] sm:$0xff]
    %v90 = vld [vmem:[%s3 + $0x10] sm:$0xff]
    %v91 = vld [vmem:[%s3 + $0x18] sm:$0xff]
    %v92 = vld [vmem:[%s4] sm:$0x1]
    %v94 = vperm.slane %v92, 0
    %vm96 = vcmask 261120
    %v98 = vsel %vm96, %v87, 0
    %100 = vmatpush.msra.mxu0 0.0
    %101 = vmatpush.msra.mxu0 0.0
    %102 = vmatpush.msra.mxu0 0.0
    %103 = vmatpush.msra.mxu0 0.0
    %104 = vmatpush.msra.mxu0 0.0
    %105 = vmatpush.msra.mxu0 0.0
    %106 = vmatpush.msra.mxu0 0.0
    %107 = vmatpush.msra.mxu0 0.0
    %108 = vmatpush.msra.mxu0 0.0
    %109 = vmatpush.msra.mxu0 0.0
    %110 = vmatpush.msra.mxu0 0.0
    %111 = vmatpush.msra.mxu0 0.0
    %112 = vmatpush.msra.mxu0 %v91
    %113 = vmatpush.msra.mxu0 %v90
    %114 = vmatpush.msra.mxu0 %v89
    %115 = vmatpush.msra.mxu0 %v88
    %116 = vmatmul.f32.gmra.mxu0 %v98
    %v117 = vpop.f32.mrf.mxu0
    %v118 = vadd.f32 %v94, %v117
    %119 = vdwg.mxu0
    %v120 = vmax.f32 %v118, 0.0
    %v121 = vld [vmem:[%s5] sm:$0xff]
    %v122 = vld [vmem:[%s5 + $0x8] sm:$0xff]
    %v123 = vld [vmem:[%s5 + $0x10] sm:$0xff]
    %v124 = vld [vmem:[%s5 + $0x18] sm:$0xff]
    %v125 = vld [vmem:[%s6] sm:$0x1]
    %v127 = vperm.slane %v125, 0
    %v130 = vsel %vm96, %v120, 0
    %132 = vmatpush.msra.mxu0 0.0
    %133 = vmatpush.msra.mxu0 0.0
    %134 = vmatpush.msra.mxu0 0.0
    %135 = vmatpush.msra.mxu0 0.0
    %136 = vmatpush.msra.mxu0 0.0
    %137 = vmatpush.msra.mxu0 0.0
    %138 = vmatpush.msra.mxu0 0.0
    %139 = vmatpush.msra.mxu0 0.0
    %140 = vmatpush.msra.mxu0 0.0
    %141 = vmatpush.msra.mxu0 0.0
    %142 = vmatpush.msra.mxu0 0.0
    %143 = vmatpush.msra.mxu0 0.0
    %144 = vmatpush.msra.mxu0 %v124
    %145 = vmatpush.msra.mxu0 %v123
    %146 = vmatpush.msra.mxu0 %v122
    %147 = vmatpush.msra.mxu0 %v121
    %148 = vmatmul.f32.gmra.mxu0 %v130
    %v149 = vpop.f32.mrf.mxu0
    %v150 = vadd.f32 %v127, %v149
    %151 = vdwg.mxu0
    %vm152 = vcmask 31744
    %153 = vst.msk [vmem:[%s7] sm:$0xff] %vm152, %v150
    // Predicated region
    $region38: #{tpu_custom_call.1} parent=1 // pred_check
      _
    $region39: #{tpu_custom_call.1} parent=1 // pred_check_branch
      %155 = sbr.rel (0) target = $region41
    $region40: #{tpu_custom_call.1} parent=1 // pred_region
      _
    $region41: #{tpu_custom_call.1} parent=1 // pred_fallthru
      _
    // Predicated region
    $region42: #{tpu_custom_call.1} parent=1 // pred_check
      _
    $region43: #{tpu_custom_call.1} parent=1 // pred_check_branch
      %157 = sbr.rel (0) target = $region45
    $region44: #{tpu_custom_call.1} parent=1 // pred_region
      _
    $region45: #{tpu_custom_call.1} parent=1 // pred_fallthru
      _
    %158 = vsyncpa [#allocation3], 1
    %159 = vsyncpa [#allocation5], 1

</llo_original>
